<compile_context>
chip_gen: v7x
topology: tpu7x:2x2x1
jax: 0.10.0
libtpu: 0.0.40
codegen_flags: <defaults>
</compile_context>

<pallas_src>
import jax
import jax.numpy as jnp
from jax import lax
from jax.experimental import pallas as pl
from jax.experimental.pallas import tpu as pltpu


def _round_up(a, b):
    return ((a + b - 1) // b) * b


def _round_down(a, b):
    return (a // b) * b


def _vmem_budgets():
    """Returns (vmem_limit_bytes, per-block budget bytes) for this TPU gen."""
    cap = 64 * 1024 * 1024
    try:
        cap = int(getattr(pltpu.get_tpu_info(), "vmem_capacity_bytes", cap))
    except Exception:
        pass
    if cap >= 128 * 1024 * 1024:          # v5e / v6e: 128 MiB VMEM
        return 100 * 1024 * 1024, 20 * 1024 * 1024
    # v7x: 64 MiB physical (32 MiB scoped default) -> keep double-buffering.
    return 48 * 1024 * 1024, 10 * 1024 * 1024


# ------------------------------------------------------------- fused path ---
def _se_gating_fused_kernel(x_ref, wt_ref, b_ref, o_ref):
    # x_ref: (nb, C, S)   wt_ref: (C, C) = (weight / S).T   b_ref: (1, C) f32
    x = x_ref[...]
    # Sum (not mean): 1/S is folded into wt.  Accumulate in f32.
    pooled = jnp.sum(x, axis=2, dtype=jnp.float32)                     # (nb, C)
    y = jnp.dot(pooled, wt_ref[...],
                preferred_element_type=jnp.float32) + b_ref[...]       # (nb, C)
    g = jax.nn.sigmoid(y).astype(o_ref.dtype)
    # Gate in the input dtype; broadcast over the lane (spatial) axis.
    o_ref[...] = x * g[:, :, None]


# ------------------------------------------------------------- tiled path ---
def _make_pool_kernel(ts, S, nchunks, parts, cpp):
    """Pass 1: per-(n, part) channel sums over lane tiles of the UNPADDED x."""
    rem = S - (nchunks - 1) * ts      # valid lanes in the globally-last chunk

    def kernel(x_ref, part_ref, acc_ref):
        # x_ref: (1, C, ts)  part_ref: (1, 1, 1, C) f32  acc_ref: (C, 1) f32
        p = pl.program_id(1)
        s = pl.program_id(2)

        @pl.when(s == 0)
        def _():
            acc_ref[...] = jnp.zeros_like(acc_ref)

        x = x_ref[0]                                                   # (C, ts)
        if rem == ts:
            # S is a multiple of ts: no masking anywhere.
            acc_ref[...] += jnp.sum(x, axis=1, keepdims=True, dtype=jnp.float32)
        else:
            is_last = jnp.logical_and(p == parts - 1, s == cpp - 1)

            @pl.when(is_last)
            def _():
                # Ragged last tile: OOB lanes hold garbage -> mask before sum.
                lane = lax.broadcasted_iota(jnp.int32, x.shape, 1)
                xm = jnp.where(lane < rem, x, 0)
                acc_ref[...] += jnp.sum(xm, axis=1, keepdims=True,
                                        dtype=jnp.float32)

            @pl.when(jnp.logical_not(is_last))
            def _():
                acc_ref[...] += jnp.sum(x, axis=1, keepdims=True,
                                        dtype=jnp.float32)

        @pl.when(s == cpp - 1)
        def _():
            # One relayout per (n, part): store the partial sums lane-dense.
            part_ref[0, 0] = acc_ref[...].T                            # (1, C)

    return kernel


def _se_gate_kernel(part_ref, wt_ref, b_ref, gate_ref):
    # part_ref: (N, P, 1, C) f32   wt_ref: (C, C) = (weight / S).T
    # b_ref: (1, C) f32            gate_ref: (N, C, 1) f32
    pooled = jnp.sum(part_ref[...], axis=(1, 2))                       # (N, C)
    y = jnp.dot(pooled, wt_ref[...],
                preferred_element_type=jnp.float32) + b_ref[...]       # (N, C)
    # Single relayout (lane-dense -> per-channel column) for all batches.
    gate_ref[...] = jax.nn.sigmoid(y)[:, :, None]


def _se_apply_gate_kernel(x_ref, g_ref, o_ref):
    # x_ref/o_ref: (1, C, ts)   g_ref: (1, C, 1) f32
    g = g_ref[0].astype(o_ref.dtype)                 # gate in the input dtype
    # Ragged last tile needs no mask: garbage OOB reads only feed OOB lanes,
    # and Pallas drops OOB writes.
    o_ref[0] = x_ref[0] * g


# ---------------------------------------------------------------- wrapper ---
def se_gating(x, weight, bias, *, block_budget_bytes=None, vmem_limit_bytes=None):
    """SEGating forward.

    x      : (N, C, T, H, W)
    weight : (C, C) or PyTorch Conv3d weight (C, C, 1, 1, 1) (squeezed here)
    bias   : (C,)
    """
    N, C, T, H, W = x.shape
    S = T * H * W
    out_dtype = x.dtype
    itemsize = jnp.dtype(out_dtype).itemsize

    if weight.ndim == 5:
        weight = weight.reshape(weight.shape[0], weight.shape[1])

    vmem_limit_default, block_budget_default = _vmem_budgets()
    if block_budget_bytes is None:
        block_budget_bytes = block_budget_default
    if vmem_limit_bytes is None:
        vmem_limit_bytes = vmem_limit_default

    x_flat = x.reshape(N, C, S)
    # Fold the 1/S of the global mean into the conv weight (kept in f32).
    wt = (weight.astype(jnp.float32) * (1.0 / S)).T                    # (C, C)
    b_row = bias.astype(jnp.float32).reshape(1, C)

    per_batch_bytes = C * S * itemsize

    if per_batch_bytes <= block_budget_bytes:
        # ---- fused single-pass path: whole (nb, C, S) slab per grid step.
        # VMEM working set ~= 2 buffers x (in block + out block)
        #                   = 4 * nb * per_batch_bytes <= 4 * block budget.
        nb_vmem = max(1, block_budget_bytes // per_batch_bytes)
        # Keep >= ~4 grid steps so double-buffering overlaps DMA with compute
        # (and both v7x TensorCores get work).
        nb_steps = max(1, N // 4)
        nb = max(1, min(nb_vmem, nb_steps, N))
        grid_n = pl.cdiv(N, nb)
        # NOTE: non-divisor nb -> last block reads garbage rows; any NaN gates
        # stay confined to OOB rows whose writes Pallas drops.  Don't "fix"
        # this with padding.
        out_flat = pl.pallas_call(
            _se_gating_fused_kernel,
            out_shape=jax.ShapeDtypeStruct((N, C, S), out_dtype),
            grid_spec=pltpu.PrefetchScalarGridSpec(
                num_scalar_prefetch=0,
                grid=(grid_n,),
                in_specs=[
                    pl.BlockSpec((nb, C, S), lambda n: (n, 0, 0)),
                    pl.BlockSpec((C, C), lambda n: (0, 0)),
                    pl.BlockSpec((1, C), lambda n: (0, 0)),
                ],
                out_specs=pl.BlockSpec((nb, C, S), lambda n: (n, 0, 0)),
            ),
            compiler_params=pltpu.CompilerParams(
                dimension_semantics=("parallel",),
                vmem_limit_bytes=vmem_limit_bytes),
        )(x_flat, wt, b_row)
        return out_flat.reshape(N, C, T, H, W)

    # ---- tiled three-stage path (no padding, no post-slice) ----
    # Pass 2 double-buffers input + output blocks (4x ts2 bytes); pass 1 only
    # its input (2x ts1), so its lane tile can be ~2x wider for the same VMEM.
    ts2 = max(128, _round_down(block_budget_bytes // (C * itemsize), 128))
    ts2 = min(ts2, _round_up(S, 128))
    ts1 = min(2 * ts2, _round_up(S, 128))

    nchunks1 = pl.cdiv(S, ts1)
    # For single-sample inputs split the S reduction into 2 core-parallel
    # parts (both v7x TensorCores get pass-1 work).  Only when it divides
    # evenly, so the ragged-tail mask stays confined to exactly one chunk.
    parts = 2 if (N == 1 and nchunks1 >= 2 and nchunks1 % 2 == 0) else 1
    cpp = nchunks1 // parts

    pool_kernel = _make_pool_kernel(ts1, S, nchunks1, parts, cpp)
    partials = pl.pallas_call(
        pool_kernel,
        out_shape=jax.ShapeDtypeStruct((N, parts, 1, C), jnp.float32),
        grid_spec=pltpu.PrefetchScalarGridSpec(
            num_scalar_prefetch=0,
            grid=(N, parts, cpp),
            in_specs=[
                pl.BlockSpec((1, C, ts1), lambda n, p, s: (n, 0, p * cpp + s)),
            ],
            out_specs=pl.BlockSpec((1, 1, 1, C), lambda n, p, s: (n, p, 0, 0)),
            scratch_shapes=[pltpu.VMEM((C, 1), jnp.float32)],
        ),
        compiler_params=pltpu.CompilerParams(
            dimension_semantics=("parallel", "parallel", "arbitrary"),
            vmem_limit_bytes=vmem_limit_bytes),
    )(x_flat)

    # Tiny gate kernel: combine partial sums, lane-dense (N,C)@(C,C) on MXU.
    gate = pl.pallas_call(
        _se_gate_kernel,
        out_shape=jax.ShapeDtypeStruct((N, C, 1), jnp.float32),
        grid_spec=pltpu.PrefetchScalarGridSpec(
            num_scalar_prefetch=0,
            grid=(1,),
            in_specs=[
                pl.BlockSpec((N, parts, 1, C), lambda i: (0, 0, 0, 0)),
                pl.BlockSpec((C, C), lambda i: (0, 0)),
                pl.BlockSpec((1, C), lambda i: (0, 0)),
            ],
            out_specs=pl.BlockSpec((N, C, 1), lambda i: (0, 0, 0)),
        ),
        compiler_params=pltpu.CompilerParams(
            dimension_semantics=("arbitrary",),
            vmem_limit_bytes=vmem_limit_bytes),
    )(partials, wt, b_row)

    # Pass 2: fully parallel gating over unpadded lane-dense tiles.
    nchunks2 = pl.cdiv(S, ts2)
    out_flat = pl.pallas_call(
        _se_apply_gate_kernel,
        out_shape=jax.ShapeDtypeStruct((N, C, S), out_dtype),
        grid_spec=pltpu.PrefetchScalarGridSpec(
            num_scalar_prefetch=0,
            grid=(N, nchunks2),
            in_specs=[
                pl.BlockSpec((1, C, ts2), lambda n, s: (n, 0, s)),
                pl.BlockSpec((1, C, 1), lambda n, s: (n, 0, 0)),
            ],
            out_specs=pl.BlockSpec((1, C, ts2), lambda n, s: (n, 0, s)),
        ),
        compiler_params=pltpu.CompilerParams(
            dimension_semantics=("parallel", "parallel"),
            vmem_limit_bytes=vmem_limit_bytes),
    )(x_flat, gate)

    return out_flat.reshape(N, C, T, H, W)


def _reference(x, weight, bias):
    pooled = jnp.mean(x, axis=(2, 3, 4))                               # (N, C)
    y = jax.nn.sigmoid(pooled @ weight.T + bias)                       # (N, C)
    return x * y[:, :, None, None, None]


if __name__ == "__main__":
    key = jax.random.PRNGKey(0)
    k_x, k_w, k_b, k_x2, k_x3 = jax.random.split(key, 5)

    # Case 1: fused single-pass path (N=4 -> 4 pipelined grid steps, S=256).
    N, C, T, H, W = 4, 16, 4, 8, 8
    x = jax.random.normal(k_x, (N, C, T, H, W), dtype=jnp.float32)
    weight = jax.random.normal(k_w, (C, C), dtype=jnp.float32) * 0.1
    bias = jax.random.normal(k_b, (C,), dtype=jnp.float32) * 0.1
    out = jax.block_until_ready(se_gating(x, weight, bias))
    ref = _reference(x, weight, bias)
    assert jnp.allclose(out, ref, atol=1e-5, rtol=1e-5), "fused path mismatch"

    # Case 2: fused path with nb=2 and a ragged batch tail (N=9, cdiv grid).
    N3 = 9
    x3 = jax.random.normal(k_x3, (N3, C, T, H, W), dtype=jnp.float32)
    out3 = jax.block_until_ready(se_gating(x3, weight, bias))
    ref3 = _reference(x3, weight, bias)
    assert jnp.allclose(out3, ref3, atol=1e-5, rtol=1e-5), "ragged fused mismatch"

    # Case 3: force the tiled three-stage path with a tiny block budget.
    # N=1 exercises the core-parallel parts split, S=300 exercises ragged-tile
    # masking in pass 1 and dropped OOB writes in pass 2 (no padding anywhere).
    N2, C2, T2, H2, W2 = 1, 8, 4, 5, 15
    x2 = jax.random.normal(k_x2, (N2, C2, T2, H2, W2), dtype=jnp.float32)
    w2 = weight[:C2, :C2]
    b2 = bias[:C2]
    out2 = jax.block_until_ready(
        se_gating(x2, w2, b2, block_budget_bytes=C2 * 128 * 4))
    ref2 = _reference(x2, w2, b2)
    assert jnp.allclose(out2, ref2, atol=1e-5, rtol=1e-5), "tiled path mismatch"

    print("KERNEL_OK")
</pallas_src>

<mosaic_0001>
module attributes {stable_mosaic.version = 11 : i64} {
  func.func @_se_gating_fused_kernel(%arg0: i32, %arg1: memref<1x16x256xf32, #tpu.memory_space<vmem>>, %arg2: memref<16x16xf32, #tpu.memory_space<vmem>>, %arg3: memref<1x16xf32, #tpu.memory_space<vmem>>, %arg4: memref<1x16x256xf32, #tpu.memory_space<vmem>>) attributes {dimension_semantics = [#tpu.dimension_semantics<parallel>], iteration_bounds = array<i64: 4>, scalar_prefetch = 0 : i64, scratch_operands = 0 : i64, tpu.core_type = #tpu.core_type<tc>, window_params = [{transform_indices = @transform_0, window_bounds = array<i64: 1, 16, 256>}, {pipeline_mode = #tpu.pipeline_mode<synchronous>, transform_indices = @transform_1, window_bounds = array<i64: 16, 16>}, {pipeline_mode = #tpu.pipeline_mode<synchronous>, transform_indices = @transform_2, window_bounds = array<i64: 1, 16>}, {transform_indices = @transform_3, window_bounds = array<i64: 1, 16, 256>}]} {
    %c0 = arith.constant 0 : index
    %c0_0 = arith.constant 0 : index
    %c0_1 = arith.constant 0 : index
    %0 = vector.load %arg1[%c0, %c0_0, %c0_1] : memref<1x16x256xf32, #tpu.memory_space<vmem>>, vector<1x16x256xf32>
    %cst = arith.constant dense<0.000000e+00> : vector<1x16xf32>
    %1 = vector.multi_reduction <add>, %0, %cst [2] : vector<1x16x256xf32> to vector<1x16xf32>
    %c0_2 = arith.constant 0 : index
    %c0_3 = arith.constant 0 : index
    %2 = vector.load %arg2[%c0_2, %c0_3] : memref<16x16xf32, #tpu.memory_space<vmem>>, vector<16x16xf32>
    %cst_4 = arith.constant dense<0.000000e+00> : vector<1x16xf32>
    %3 = tpu.matmul %1, %2, %cst_4 {dimension_numbers = #tpu.dot_dimension_numbers<[1], [0], [0], [1], [0, 0, 1, 1], [], []>} : vector<1x16xf32>, vector<16x16xf32>, vector<1x16xf32> -> vector<1x16xf32>
    %c0_5 = arith.constant 0 : index
    %c0_6 = arith.constant 0 : index
    %4 = vector.load %arg3[%c0_5, %c0_6] : memref<1x16xf32, #tpu.memory_space<vmem>>, vector<1x16xf32>
    %5 = arith.addf %3, %4 : vector<1x16xf32>
    %6 = arith.negf %5 : vector<1x16xf32>
    %7 = math.exp %6 : vector<1x16xf32>
    %cst_7 = arith.constant 1.000000e+00 : f32
    %8 = vector.broadcast %cst_7 : f32 to vector<1x16xf32>
    %9 = arith.addf %8, %7 : vector<1x16xf32>
    %10 = arith.divf %8, %9 : vector<1x16xf32>
    %11 = vector.shape_cast %10 : vector<1x16xf32> to vector<1x16x1xf32>
    %12 = vector.broadcast %11 : vector<1x16x1xf32> to vector<1x16x256xf32>
    %13 = arith.mulf %0, %12 : vector<1x16x256xf32>
    %c0_8 = arith.constant 0 : index
    %c0_9 = arith.constant 0 : index
    %c0_10 = arith.constant 0 : index
    %14 = vector.load %arg4[%c0_8, %c0_9, %c0_10] : memref<1x16x256xf32, #tpu.memory_space<vmem>>, vector<1x16x256xf32>
    tpu.vector_store %arg4[%c0_8, %c0_9, %c0_10], %13 {strides = array<i32>} : memref<1x16x256xf32, #tpu.memory_space<vmem>>, vector<1x16x256xf32>,
    return
  }
  func.func @transform_0(%arg0: i32) -> (i32, i32, i32) {
    %c0_i32 = arith.constant 0 : i32
    %c0_i32_0 = arith.constant 0 : i32
    %c0_i32_1 = arith.constant 0 : i32
    return %arg0, %c0_i32, %c0_i32_0 : i32, i32, i32
  }
  func.func @transform_1(%arg0: i32) -> (i32, i32) {
    %c0_i32 = arith.constant 0 : i32
    %c0_i32_0 = arith.constant 0 : i32
    %c0_i32_1 = arith.constant 0 : i32
    return %c0_i32, %c0_i32_0 : i32, i32
  }
  func.func @transform_2(%arg0: i32) -> (i32, i32) {
    %c0_i32 = arith.constant 0 : i32
    %c0_i32_0 = arith.constant 0 : i32
    %c0_i32_1 = arith.constant 0 : i32
    return %c0_i32, %c0_i32_0 : i32, i32
  }
  func.func @transform_3(%arg0: i32) -> (i32, i32, i32) {
    %c0_i32 = arith.constant 0 : i32
    %c0_i32_0 = arith.constant 0 : i32
    %c0_i32_1 = arith.constant 0 : i32
    return %arg0, %c0_i32, %c0_i32_0 : i32, i32, i32
  }
}

</mosaic_0001>

<llo_original>
// kernel: tpu_custom_call.1
$region0: #{tpu_custom_call.1}
  #allocation0 [shape = 'u32[]', space=smem, size = 0x4, offset = 0x4, fixed_abs, tag = 'smem constant byte address 0x4 - core index']
  #allocation1 [shape = 'u32[144,128]{1,0:T(1,128)}', space=vmem, size = 0x12000, scoped, tag = 'internal scratch']
  %s0 = inlined_call_operand.hbm [shape: f32[4,16,256], index: 0, kind: input, shape index: {}]
  %s1 = inlined_call_operand.hbm [shape: f32[16,16], index: 1, kind: input, shape index: {}]
  %s2 = inlined_call_operand.vmem [shape: f32[1,16], index: 2, kind: input, shape index: {}]
  %s3 = inlined_call_operand.hbm [shape: f32[4,16,256], index: 3, kind: output, shape index: {}]
  %s4 = sld [smem:[#allocation0]]
  $region53: #{tpu_custom_call.1} parent=0
    _
  %s6 = ssub.s32 1, %s4
  %s7 = scalar_select 0, %s6, %s4
  $region1: #{tpu_custom_call.1} parent=0
    #allocation2 [shape = 'u8[32768]{0}', space=vmem, size = 0x8000, scoped, tag = 'input window, operand 0']
    #allocation3 [shape = 's32[2]{0}', space=sflag, size = 0x8, scoped, tag = 'scoped memory for tpu_custom_call.1']
    #allocation4 [shape = 's32[2]{0}', space=sflag, size = 0x8, scoped, tag = 'scoped memory for tpu_custom_call.1']
    #allocation5 [shape = 'u8[8192]{0}', space=vmem, size = 0x2000, scoped, tag = 'input window, operand 1, single buffered']
    #allocation6 [shape = 's32[1]{0}', space=sflag, size = 0x4, scoped, tag = 'scoped memory for tpu_custom_call.1']
    #allocation7 [shape = 'u8[32768]{0}', space=vmem, size = 0x8000, scoped, tag = 'output window, operand 0']
    %8 = vsyncpa [#allocation3], 0
    %s9 = scalar_lea.sflag [#allocation3], 1
    %10 = vsyncpa %s9, 0
    %11 = vsyncpa [#allocation6], 0
    %12 = vsyncpa [#allocation4], 0
    %s13 = scalar_lea.sflag [#allocation4], 1
    %14 = vsyncpa %s13, 0
    loop: start=0, step=1, limit=6
    $region2: #{tpu_custom_call.1} parent=1 // loop_pre_header
      _
    $region3: #{tpu_custom_call.1} parent=1 // loop_header
      %s16 = sphi 0, %s20
      %p17 = scmp.ge.s32.totalorder %s16, 6
      %s26 = sphi 0, %s28
      %s29 = sphi 0, %s26
      %s30 = sphi 0, %s29
      %s46 = sphi 0, %s30
      %s50 = sphi 0, %s50
      %s52 = sphi 0, %s50
      %s53 = sphi 0, %s52
      %s67 = sphi 0, %s53
      %s71 = sphi 0, %s71
      %s73 = sphi 0, %s71
      %s74 = sphi 0, %s73
      %s88 = sphi 0, %s74
      %s94 = sphi 0, %s96
      %s97 = sphi 0, %s94
      %s98 = sphi 0, %s97
      %s114 = sphi 0, %s98
    $region4: #{tpu_custom_call.1} parent=1 // loop_header_branch
      %19 = sbr.rel (%p17) target = $region8
    $region5: #{tpu_custom_call.1} parent=1 // loop_body
      %s21 = ssub.s32 %s16, 1
      %s22 = ssub.s32 %s16, 2
      %s23 = sadd.s32 %s16, 1
      %s24 = ssub.s32 %s16, %s23
      %p25 = scmp.eq.s32.totalorder %s24, 0
      %s27 = sadd.s32 %s26, 1
      %s28 = scalar_select %p25, %s26, %s27
      %p31 = pneg %p25
      %p32 = scmp.eq.s32.totalorder %s16, 3
      %p33 = por %p31, %p32
      %p34 = scmp.ne.s32.totalorder %s26, %s29
      %p35 = scmp.eq.s32.totalorder %s16, 0
      %p36 = por %p34, %p35
      %p37 = scmp.ne.s32.totalorder %s26, %s29
      %p38 = scmp.eq.s32.totalorder %s21, 3
      %p39 = por %p37, %p38
      %p40 = scmp.ne.s32.totalorder %s29, %s30
      %p41 = scmp.eq.s32.totalorder %s21, 0
      %p42 = por %p40, %p41
      %p43 = scmp.ne.s32.totalorder %s29, %s30
      %p44 = scmp.eq.s32.totalorder %s22, 3
      %p45 = por %p43, %p44
      %p47 = scmp.ne.s32.totalorder %s30, %s46
      %p48 = scmp.eq.s32.totalorder %s22, 0
      %p49 = por %p47, %p48
      %s51 = sadd.s32 %s50, 1
      %p54 = scmp.eq.s32.totalorder %s16, 3
      %p55 = scmp.ne.s32.totalorder %s50, %s52
      %p56 = scmp.eq.s32.totalorder %s16, 0
      %p57 = por %p55, %p56
      %p58 = scmp.ne.s32.totalorder %s50, %s52
      %p59 = scmp.eq.s32.totalorder %s21, 3
      %p60 = por %p58, %p59
      %p61 = scmp.ne.s32.totalorder %s52, %s53
      %p62 = scmp.eq.s32.totalorder %s21, 0
      %p63 = por %p61, %p62
      %p64 = scmp.ne.s32.totalorder %s52, %s53
      %p65 = scmp.eq.s32.totalorder %s22, 3
      %p66 = por %p64, %p65
      %p68 = scmp.ne.s32.totalorder %s53, %s67
      %p69 = scmp.eq.s32.totalorder %s22, 0
      %p70 = por %p68, %p69
      %s72 = sadd.s32 %s71, 1
      %p75 = scmp.eq.s32.totalorder %s16, 3
      %p76 = scmp.ne.s32.totalorder %s71, %s73
      %p77 = scmp.eq.s32.totalorder %s16, 0
      %p78 = por %p76, %p77
      %p79 = scmp.ne.s32.totalorder %s71, %s73
      %p80 = scmp.eq.s32.totalorder %s21, 3
      %p81 = por %p79, %p80
      %p82 = scmp.ne.s32.totalorder %s73, %s74
      %p83 = scmp.eq.s32.totalorder %s21, 0
      %p84 = por %p82, %p83
      %p85 = scmp.ne.s32.totalorder %s73, %s74
      %p86 = scmp.eq.s32.totalorder %s22, 3
      %p87 = por %p85, %p86
      %p89 = scmp.ne.s32.totalorder %s74, %s88
      %p90 = scmp.eq.s32.totalorder %s22, 0
      %p91 = por %p89, %p90
      %s92 = ssub.s32 %s16, %s23
      %p93 = scmp.eq.s32.totalorder %s92, 0
      %s95 = sadd.s32 %s94, 1
      %s96 = scalar_select %p93, %s94, %s95
      %p99 = pneg %p93
      %p100 = scmp.eq.s32.totalorder %s16, 3
      %p101 = por %p99, %p100
      %p102 = scmp.ne.s32.totalorder %s94, %s97
      %p103 = scmp.eq.s32.totalorder %s16, 0
      %p104 = por %p102, %p103
      %p105 = scmp.ne.s32.totalorder %s94, %s97
      %p106 = scmp.eq.s32.totalorder %s21, 3
      %p107 = por %p105, %p106
      %p108 = scmp.ne.s32.totalorder %s97, %s98
      %p109 = scmp.eq.s32.totalorder %s21, 0
      %p110 = por %p108, %p109
      %p111 = scmp.ne.s32.totalorder %s97, %s98
      %p112 = scmp.eq.s32.totalorder %s22, 3
      %p113 = por %p111, %p112
      %p115 = scmp.ne.s32.totalorder %s98, %s114
      %p116 = scmp.eq.s32.totalorder %s22, 0
      %p117 = por %p115, %p116
      %p118 = scmp.le.s32.totalorder 1, %s16
      %p119 = scmp.lt.s32.totalorder %s16, 5
      %p120 = pnand %p118, %p119
      %p121 = pneg %p120
      // Predicated region
      $region9: #{tpu_custom_call.1} parent=5 // pred_check
        _
      $region10: #{tpu_custom_call.1} parent=5 // pred_check_branch
        %123 = sbr.rel (%p120) target = $region12
      $region11: #{tpu_custom_call.1} parent=5 // pred_region
        %s124 = ssub.s32 %s16, 1
        // Predicated region
        $region13: #{tpu_custom_call.1} parent=11 // pred_check
          %p125 = pneg %p63
        $region14: #{tpu_custom_call.1} parent=11 // pred_check_branch
          %127 = sbr.rel (%p125) target = $region16
        $region15: #{tpu_custom_call.1} parent=11 // pred_region
          %s129 = ssub.s32 256, 256
          %130 = vsyncadd [#allocation6], %s129
          %s131 = sshll.u32 [#allocation5], 4
          %s132 = int_to_ptr.vmem [resolvable:$true] %s131
          %137 = dma.hbm_to_vmem [thread:$0]  %s1, 256, %s132, [#allocation6], 128, 128, 8
        $region16: #{tpu_custom_call.1} parent=11 // pred_fallthru
          _
        // Predicated region
        $region17: #{tpu_custom_call.1} parent=11 // pred_check
          %p138 = pneg %p84
        $region18: #{tpu_custom_call.1} parent=11 // pred_check_branch
          %140 = sbr.rel (%p138) target = $region20
        $region19: #{tpu_custom_call.1} parent=11 // pred_region
          _
        $region20: #{tpu_custom_call.1} parent=11 // pred_fallthru
          _
      $region12: #{tpu_custom_call.1} parent=5 // pred_fallthru
        _
      %p141 = scmp.lt.s32.totalorder %s16, 4
      // Predicated region
      $region21: #{tpu_custom_call.1} parent=5 // pred_check
        %p142 = pneg %p141
      $region22: #{tpu_custom_call.1} parent=5 // pred_check_branch
        %144 = sbr.rel (%p142) target = $region24
      $region23: #{tpu_custom_call.1} parent=5 // pred_region
        // Predicated region
        $region25: #{tpu_custom_call.1} parent=23 // pred_check
          %p145 = pneg %p36
        $region26: #{tpu_custom_call.1} parent=23 // pred_check_branch
          %147 = sbr.rel (%p145) target = $region28
        $region27: #{tpu_custom_call.1} parent=23 // pred_region
          %s148 = sand.u32 %s26, 1
          %s149 = scalar_lea.sflag [#allocation3], %s148
          %s150 = sand.u32 %s26, 1
          %s151 = smul.addr %s150, 32
          %s152 = scalar_lea.vmem [#allocation2], %s151
          %s154 = ssub.s32 512, 512
          %155 = vsyncadd %s149, %s154
          %s156 = smul.addr %s16, 4
          %s157 = smul.addr %s156, 128
          %s158 = scalar_lea.hbm %s0, %s157
          %s159 = sshll.u32 %s152, 4
          %s160 = int_to_ptr.vmem [resolvable:$true] %s159
          %165 = dma.hbm_to_vmem [thread:$0]  %s158, 512, %s160, %s149, 256, 256, 16
        $region28: #{tpu_custom_call.1} parent=23 // pred_fallthru
          _
      $region24: #{tpu_custom_call.1} parent=5 // pred_fallthru
        _
      %p166 = scmp.le.s32.totalorder 1, %s16
      %p167 = scmp.lt.s32.totalorder %s16, 5
      %p168 = pnand %p166, %p167
      %p169 = pneg %p168
      // Predicated region
      $region29: #{tpu_custom_call.1} parent=5 // pred_check
        _
      $region30: #{tpu_custom_call.1} parent=5 // pred_check_branch
        %171 = sbr.rel (%p168) target = $region32
      $region31: #{tpu_custom_call.1} parent=5 // pred_region
        %s172 = ssub.s32 %s16, 1
        %s173 = sand.u32 %s29, 1
        %s174 = scalar_lea.sflag [#allocation3], %s173
        %s175 = sand.u32 %s29, 1
        %s176 = smul.addr %s175, 32
        %s177 = scalar_lea.vmem [#allocation2], %s176
        // Predicated region
        $region33: #{tpu_custom_call.1} parent=31 // pred_check
          %p178 = pneg %p42
        $region34: #{tpu_custom_call.1} parent=31 // pred_check_branch
          %180 = sbr.rel (%p178) target = $region36
        $region35: #{tpu_custom_call.1} parent=31 // pred_region
          %181 = dma.done %s174, 512
        $region36: #{tpu_custom_call.1} parent=31 // pred_fallthru
          _
        // Predicated region
        $region37: #{tpu_custom_call.1} parent=31 // pred_check
          %p182 = pneg %p63
        $region38: #{tpu_custom_call.1} parent=31 // pred_check_branch
          %184 = sbr.rel (%p182) target = $region40
        $region39: #{tpu_custom_call.1} parent=31 // pred_region
          %185 = dma.done [#allocation6], 256
        $region40: #{tpu_custom_call.1} parent=31 // pred_fallthru
          _
        %s186 = sand.u32 %s29, 1
        %s187 = scalar_lea.sflag [#allocation3], %s186
        %s188 = sand.u32 %s29, 1
        %s189 = smul.addr %s188, 32
        %s190 = scalar_lea.vmem [#allocation2], %s189
        %p191 = pneg %p42
        %p192 = pneg %p39
        %p193 = pneg %p63
        %p194 = pneg %p60
        %p195 = pneg %p84
        %p196 = pneg %p81
        %p197 = pneg %p110
        %p198 = pneg %p107
        %s199 = sand.u32 %s97, 1
        %s200 = scalar_lea.sflag [#allocation4], %s199
        %s201 = sand.u32 %s97, 1
        %s202 = smul.addr %s201, 32
        %s203 = scalar_lea.vmem [#allocation7], %s202
        %v204 = vld [vmem:[%s177] sm:$0xff]
        %v205 = vld [vmem:[%s177 + $0x8] sm:$0xff]
        %v206 = vld [vmem:[%s177 + $0x10] sm:$0xff]
        %v207 = vld [vmem:[%s177 + $0x18] sm:$0xff]
        %v208 = vadd.f32 %v204, %v205
        %209 = vadd.xlane.f32.xlu0 %v208
        %v210 = vpop.xlane.xlu0 %209
        %v211 = vadd.f32 %v206, %v207
        %212 = vadd.xlane.f32.xlu0 %v211
        %v213 = vpop.xlane.xlu0 %212
        %v214 = vld [vmem:[#allocation5] sm:$0xff]
        %v215 = vld [vmem:[#allocation5 + $0x8] sm:$0xff]
        %v216 = vld [vmem:[%s2] sm:$0x1]
        %v219 = vlaneseq
        %v220 = vand.u32 %v219, 127
        %v221 = vlaneseq
        %v222 = vshrl.u32 %v221, 7
        %v223 = vsub.s32 %v220, %v222
        %v224 = vrot.slane %v210, %v223
        %v225 = vadd.s32 %v220, 4294967288
        %v226 = vlaneseq
        %v227 = vshrl.u32 %v226, 7
        %v228 = vsub.s32 %v225, %v227
        %v229 = vrot.slane %v213, %v228
        %vm230 = vcmask 130112
        %v231 = vsel %vm230, %v229, %v224
        %vm232 = vcmask 130048
        %v233 = vsel %vm232, %v231, 0
        %235 = vmatprep.subr.mxu0 0.0
        %236 = vmatpush1.msra.mxu0 %v214
        %237 = vmatprep.subr.mxu0 0.0
        %238 = vmatpush1.msra.mxu0 %v215
        %239 = vmatprep.subr.mxu0 0.0
        %240 = vmatpush1.msra.mxu0 0.0
        %241 = vmatprep.subr.mxu0 0.0
        %242 = vmatpush1.msra.mxu0 0.0
        %243 = vmatprep.subr.mxu0 0.0
        %244 = vmatpush1.msra.mxu0 0.0
        %245 = vmatprep.subr.mxu0 0.0
        %246 = vmatpush1.msra.mxu0 0.0
        %247 = vmatprep.subr.mxu0 0.0
        %248 = vmatpush1.msra.mxu0 0.0
        %249 = vmatprep.subr.mxu0 0.0
        %250 = vmatpush1.msra.mxu0 0.0
        %251 = vmatprep.subr.mxu0 0.0
        %252 = vmatpush1.msra.mxu0 0.0
        %253 = vmatprep.subr.mxu0 0.0
        %254 = vmatpush1.msra.mxu0 0.0
        %255 = vmatprep.subr.mxu0 0.0
        %256 = vmatpush1.msra.mxu0 0.0
        %257 = vmatprep.subr.mxu0 0.0
        %258 = vmatpush1.msra.mxu0 0.0
        %259 = vmatprep.subr.mxu0 0.0
        %260 = vmatpush1.msra.mxu0 0.0
        %261 = vmatprep.subr.mxu0 0.0
        %262 = vmatpush1.msra.mxu0 0.0
        %263 = vmatprep.subr.mxu0 0.0
        %264 = vmatpush1.msra.mxu0 0.0
        %265 = vmatprep.subr.mxu0 0.0
        %266 = vmatpush1.msra.mxu0 0.0
        %267 = vmatprep.subr.mxu0 0.0
        %268 = vmatpush1.msra.mxu0 0.0
        %269 = vmatprep.subr.mxu0 0.0
        %270 = vmatpush1.msra.mxu0 0.0
        %271 = vmatprep.subr.mxu0 0.0
        %272 = vmatpush1.msra.mxu0 0.0
        %273 = vmatprep.subr.mxu0 0.0
        %274 = vmatpush1.msra.mxu0 0.0
        %275 = vmatprep.subr.mxu0 0.0
        %276 = vmatpush1.msra.mxu0 0.0
        %277 = vmatprep.subr.mxu0 0.0
        %278 = vmatpush1.msra.mxu0 0.0
        %279 = vmatprep.subr.mxu0 0.0
        %280 = vmatpush1.msra.mxu0 0.0
        %281 = vmatprep.subr.mxu0 0.0
        %282 = vmatpush1.msra.mxu0 0.0
        %283 = vmatprep.subr.mxu0 0.0
        %284 = vmatpush1.msra.mxu0 0.0
        %285 = vmatprep.subr.mxu0 0.0
        %286 = vmatpush1.msra.mxu0 0.0
        %287 = vmatprep.subr.mxu0 0.0
        %288 = vmatpush1.msra.mxu0 0.0
        %289 = vmatprep.subr.mxu0 0.0
        %290 = vmatpush1.msra.mxu0 0.0
        %291 = vmatprep.subr.mxu0 0.0
        %292 = vmatpush1.msra.mxu0 0.0
        %293 = vmatprep.subr.mxu0 0.0
        %294 = vmatpush1.msra.mxu0 0.0
        %295 = vmatprep.subr.mxu0 0.0
        %296 = vmatpush1.msra.mxu0 0.0
        %297 = vmatprep.subr.mxu0 0.0
        %298 = vmatpush1.msra.mxu0 0.0
        %299 = vmatprep.mubr.f32.mxu0 0.0
        %300 = vmatmul.mubr.f32.gmra.mrb[0].mxu0 %v233
        %v301 = vpop.f32.mrb[0].mxu0
        %v302 = vadd.f32 %v216, %v301
        %v303 = vpop.f32.mrb[0].mxu0
        %304 = vdwg.mxu0
        %v305 = vxor.u32 %v302, 2147483648
        %v306 = vmul.f32 %v305, 1.442695
        %v307 = vpow.pop %v306
        %v308 = vadd.f32 %v307, 1.0
        %v309 = vrcp.pop %v308
        %v310 = vmul.f32 1.0, %v309
        %v311 = vlaneseq
        %v312 = vshrl.u32 %v311, 7
        %v313 = vsub.s32 0, %v312
        %v314 = vrot.slane %v310, %v313
        %316 = vbcast.lane.b32.xlu0 %v314, 256
        %v317 = vpop.permute.xlu0 %316
        %s319 = sor.u32 256, 8
        %320 = vbcast.lane.b32.xlu0 %v314, %s319
        %v321 = vpop.permute.xlu0 %320
        %v322 = vmul.f32 %v204, %v317
        %v323 = vmul.f32 %v205, %v317
        %v324 = vmul.f32 %v206, %v321
        %v325 = vmul.f32 %v207, %v321
        %326 = vst [vmem:[%s203] sm:$0xff] %v322
        %327 = vst [vmem:[%s203 + $0x8] sm:$0xff] %v323
        %328 = vst [vmem:[%s203 + $0x10] sm:$0xff] %v324
        %329 = vst [vmem:[%s203 + $0x18] sm:$0xff] %v325
        %s330 = sand.u32 %s97, 1
        %s331 = scalar_lea.sflag [#allocation4], %s330
        %s332 = sand.u32 %s97, 1
        %s333 = smul.addr %s332, 32
        %s334 = scalar_lea.vmem [#allocation7], %s333
        // Predicated region
        $region41: #{tpu_custom_call.1} parent=31 // pred_check
          %p335 = pneg %p107
        $region42: #{tpu_custom_call.1} parent=31 // pred_check_branch
          %337 = sbr.rel (%p335) target = $region44
        $region43: #{tpu_custom_call.1} parent=31 // pred_region
          %s339 = ssub.s32 512, 512
          %340 = vsyncadd %s331, %s339
          %s341 = smul.addr %s21, 4
          %s342 = smul.addr %s341, 128
          %s343 = scalar_lea.hbm %s3, %s342
          %s344 = sshll.u32 %s334, 4
          %s345 = int_to_ptr.vmem [resolvable:$true] %s344
          %350 = dma.vmem_to_hbm [thread:$0]  %s345, 512, %s343, %s331, 256, 256, 16
        $region44: #{tpu_custom_call.1} parent=31 // pred_fallthru
          _
      $region32: #{tpu_custom_call.1} parent=5 // pred_fallthru
        _
      %p351 = scmp.le.s32.totalorder 2, %s16
      // Predicated region
      $region45: #{tpu_custom_call.1} parent=5 // pred_check
        %p352 = pneg %p351
      $region46: #{tpu_custom_call.1} parent=5 // pred_check_branch
        %354 = sbr.rel (%p352) target = $region48
      $region47: #{tpu_custom_call.1} parent=5 // pred_region
        %s355 = ssub.s32 %s16, 2
        // Predicated region
        $region49: #{tpu_custom_call.1} parent=47 // pred_check
          %p356 = pneg %p113
        $region50: #{tpu_custom_call.1} parent=47 // pred_check_branch
          %358 = sbr.rel (%p356) target = $region52
        $region51: #{tpu_custom_call.1} parent=47 // pred_region
          %s359 = sand.u32 %s98, 1
          %s360 = scalar_lea.sflag [#allocation4], %s359
          %s361 = sand.u32 %s98, 1
          %s362 = smul.addr %s361, 32
          %s363 = scalar_lea.vmem [#allocation7], %s362
          %364 = dma.done %s360, 512
        $region52: #{tpu_custom_call.1} parent=47 // pred_fallthru
          _
      $region48: #{tpu_custom_call.1} parent=5 // pred_fallthru
        _
    $region6: #{tpu_custom_call.1} parent=1 // loop_footer
      %s20 = sadd.s32 1, %s16
    $region7: #{tpu_custom_call.1} parent=1 // loop_footer_branch
      %15 = sbr.rel target = $region3
    $region8: #{tpu_custom_call.1} parent=1 // loop_exit
      _
    %365 = vsyncpa [#allocation3], 1
    %s366 = scalar_lea.sflag [#allocation3], 1
    %367 = vsyncpa %s366, 1
    %368 = vsyncpa [#allocation6], 1
    %369 = vsyncpa [#allocation4], 1
    %s370 = scalar_lea.sflag [#allocation4], 1
    %371 = vsyncpa %s370, 1

</llo_original>
